<compile_context>
chip_gen: v7x
topology: tpu7x:2x2x1
jax: 0.10.0
libtpu: 0.0.40
codegen_flags: <defaults>
</compile_context>

<pallas_src>
import jax
import jax.numpy as jnp
from jax.experimental import pallas as pl
from jax.experimental.pallas import tpu as pltpu

BN_EPS = 1e-5
NEG = -1e30  # bias padding for softmax heads; exp underflows to exactly 0.0


def _round_up(x, m):
    return ((x + m - 1) // m) * m


def _cdiv(a, b):
    return -(-a // b)


def _tpu_generation():
    try:
        kind = jax.devices()[0].device_kind.lower()
    except Exception:
        return "unknown"
    if "v5" in kind:
        return "v5"
    if "v6" in kind:
        return "v6"
    if "v7" in kind or "7x" in kind:
        return "v7"
    return "unknown"


def _vmem_cap_bytes():
    """~75% of physical VMEM: ~96 MiB on v5e/v6e (128 MiB), ~48 MiB on v7x (64 MiB)."""
    try:
        phys = int(pltpu.get_tpu_info().vmem_capacity_bytes)
    except Exception:
        phys = 64 * 1024 * 1024  # conservative fallback
    return max((phys * 3) // 4, 16 * 1024 * 1024)


def _vmem_footprint(TB, Dp, Hp, Lp, Cp, n_layers, pinned, dsz):
    """Approximate VMEM bytes (default depth-2 pipelining on every input/output)."""
    const = (2 * (Dp * Hp + Hp * 2 * Lp + Lp * Cp) * dsz
             + 2 * (Hp + 2 * Lp + Cp) * 4)                      # w_in/w_zy/w_p + biases
    if n_layers > 0:
        if pinned:
            wh = 2 * n_layers * (Hp * Hp * dsz + Hp * 4)        # resident full stack
        else:
            wh = 2 * (Hp * Hp * dsz + Hp * 4)                   # streamed (1,Hp,Hp)
    else:
        wh = 0
    per_tile = (2 * TB * Dp * dsz                               # x tile (double-buffered)
                + TB * Hp * dsz                                 # h scratch
                + 2 * TB * (2 * Lp + Cp) * 4)                   # z / y / yp outputs
    return const + wh + per_tile


def _choose_tiling(B, Dp, Hp, Lp, Cp, n_layers, gen, vmem_cap, dsz):
    """Pick batch tile TB, padded batch Bp and hidden-weight residency (pinned)."""
    Bp0 = _round_up(B, 8)
    tb_target = {"v5": 512, "v6": 768, "v7": 512}.get(gen, 512)

    if Bp0 <= tb_target:
        # One tile is enough for arithmetic intensity — except on v7x where we
        # want >= 2 tiles for the two TensorCores when the batch is big enough.
        if gen == "v7" and Bp0 >= 768:
            TB = _round_up(_cdiv(Bp0, 2), 256)
        else:
            TB = Bp0
    else:
        nt = _cdiv(Bp0, tb_target)
        if gen == "v7":
            nt = max(nt, 2)
        TB = _round_up(_cdiv(Bp0, nt), 256)

    # Shrink TB / choose weight residency until the VMEM budget fits.
    pinned = False
    while True:
        if n_layers > 0 and _vmem_footprint(TB, Dp, Hp, Lp, Cp, n_layers,
                                            True, dsz) <= vmem_cap:
            pinned = True
            break
        if _vmem_footprint(TB, Dp, Hp, Lp, Cp, n_layers, False, dsz) <= vmem_cap:
            pinned = False
            break
        if TB > 256:
            TB -= 256
        elif TB > 8:
            TB = _round_up(TB // 2, 8)
        else:
            # TODO(synk): column-tiled w_h needed for extreme Hp on v7x.
            pinned = False
            break

    Bp = _round_up(Bp0, TB)
    return TB, Bp, pinned


# ----------------------------------------------------------------------------
# Kernel (closure over static structure flags)
# ----------------------------------------------------------------------------
def _make_encoder_kernel(has_hidden, pinned):
    def kernel(*refs):
        if has_hidden:
            (x_ref, w_in_ref, b_in_ref, w_h_ref, b_h_ref,
             w_zy_ref, b_zy_ref, w_p_ref, b_p_ref,
             z_ref, y_ref, yp_ref, h_ref) = refs
        else:
            (x_ref, w_in_ref, b_in_ref,
             w_zy_ref, b_zy_ref, w_p_ref, b_p_ref,
             z_ref, y_ref, yp_ref, h_ref) = refs
            w_h_ref = b_h_ref = None

        l = pl.program_id(1)
        last = pl.num_programs(1) - 1
        Lp = w_zy_ref.shape[1] // 2  # static

        # ---- input block: Linear -> ReLU (BN folded into the next linear) ----
        @pl.when(l == 0)
        def _():
            a = jnp.dot(x_ref[...], w_in_ref[...],
                        preferred_element_type=jnp.float32) + b_in_ref[...]
            h_ref[...] = jnp.maximum(a, 0.0).astype(h_ref.dtype)

        # ---- hidden block l-1 (previous block's BN folded into this linear) ----
        if has_hidden:
            @pl.when(l > 0)
            def _():
                if pinned:
                    idx = jnp.maximum(l - 1, 0)   # resident stack, dynamic layer index
                else:
                    idx = 0                       # streamed (1, Hp, Hp) block
                a = jnp.dot(h_ref[...], w_h_ref[idx],
                            preferred_element_type=jnp.float32) + b_h_ref[idx]
                h_ref[...] = jnp.maximum(a, 0.0).astype(h_ref.dtype)

        # ---- heads (last BN folded into head linears), fused z|y matmul ----
        # Note: at l == last this reads h_ref AFTER the hidden-block write above;
        # Mosaic preserves the order via the h_ref data dependency.
        @pl.when(l == last)
        def _():
            h = h_ref[...]
            zy = jnp.dot(h, w_zy_ref[...],
                         preferred_element_type=jnp.float32) + b_zy_ref[...]
            z = zy[:, :Lp]
            y_logits = zy[:, Lp:]

            m = jnp.max(y_logits, axis=-1, keepdims=True)
            e = jnp.exp(y_logits - m)
            y = e * pl.reciprocal(jnp.sum(e, axis=-1, keepdims=True), approx=True)

            p_logits = jnp.dot(y.astype(w_p_ref.dtype), w_p_ref[...],
                               preferred_element_type=jnp.float32) + b_p_ref[...]
            mp = jnp.max(p_logits, axis=-1, keepdims=True)
            ep = jnp.exp(p_logits - mp)
            yp = ep * pl.reciprocal(jnp.sum(ep, axis=-1, keepdims=True), approx=True)

            z_ref[...] = z
            y_ref[...] = y
            yp_ref[...] = yp

    return kernel


# ----------------------------------------------------------------------------
# Wrapper: BN folding, padding, tiling, pallas_call
# ----------------------------------------------------------------------------
def _fold_batchnorm(params, n_layers):
    """Fold eval-mode BN (which follows the ReLU) into the *next* Linear (f32)."""
    s_in = params["g_in"] * jax.lax.rsqrt(params["var_in"] + BN_EPS)   # (1, H)
    t_in = params["be_in"] - params["mu_in"] * s_in                    # (1, H)
    w_in_f, b_in_f = params["w_in"], params["b_in"]  # no BN before input linear

    if n_layers > 0:
        s_h = params["g_h"] * jax.lax.rsqrt(params["var_h"] + BN_EPS)  # (L, 1, H)
        t_h = params["be_h"] - params["mu_h"] * s_h                    # (L, 1, H)
        w_h = params["w_h"][:n_layers]
        b_h = params["b_h"][:n_layers]
        s_prev = jnp.concatenate([s_in[None], s_h[:n_layers - 1]], axis=0)
        t_prev = jnp.concatenate([t_in[None], t_h[:n_layers - 1]], axis=0)
        w_h_f = w_h * jnp.swapaxes(s_prev, 1, 2)                  # scale input rows
        b_h_f = b_h + jnp.einsum("lij,ljk->lik", t_prev, w_h)     # shift -> bias
        s_last, t_last = s_h[n_layers - 1], t_h[n_layers - 1]
    else:
        w_h_f = b_h_f = None
        s_last, t_last = s_in, t_in

    w_z_f = params["w_z"] * s_last.T
    b_z_f = params["b_z"] + t_last @ params["w_z"]
    w_y_f = params["w_y"] * s_last.T
    b_y_f = params["b_y"] + t_last @ params["w_y"]
    return w_in_f, b_in_f, w_h_f, b_h_f, w_z_f, b_z_f, w_y_f, b_y_f


def encoder_forward(x, params, n_layers, *, compute_dtype=jnp.bfloat16):
    B, D = x.shape
    H = params["w_in"].shape[1]
    latent = params["w_z"].shape[1]
    n_classes = params["w_p"].shape[1]

    gen = _tpu_generation()
    vmem_cap = _vmem_cap_bytes()
    dsz = jnp.dtype(compute_dtype).itemsize

    # ---- fold eval-mode BatchNorm into the following Linear (f32, wrapper) ----
    w_in, b_in, w_h, b_h, w_z, b_z, w_y, b_y = _fold_batchnorm(params, n_layers)
    w_p, b_p = params["w_p"], params["b_p"]

    # ---- lane-dense padding (multiples of 128; Hp -> 256 on v6e/v7x when cheap) ----
    Dp = _round_up(D, 128)
    Hp = _round_up(H, 128)
    if gen in ("v6", "v7") and Hp >= 512 and Hp % 256 != 0:
        Hp += 128  # fill the 256x256 MXU when the extra padded FLOPs are small
    Lp = _round_up(latent, 128)
    Cp = _round_up(n_classes, 128)

    TB, Bp, pinned = _choose_tiling(B, Dp, Hp, Lp, Cp, n_layers, gen, vmem_cap, dsz)

    # ---- pad & cast parameters ----
    w_in = jnp.pad(w_in, ((0, Dp - D), (0, Hp - H)))
    b_in = jnp.pad(b_in, ((0, 0), (0, Hp - H)))

    w_z = jnp.pad(w_z, ((0, Hp - H), (0, Lp - latent)))
    b_z = jnp.pad(b_z, ((0, 0), (0, Lp - latent)))
    w_y = jnp.pad(w_y, ((0, Hp - H), (0, Lp - latent)))
    b_y = jnp.pad(b_y, ((0, 0), (0, Lp - latent)), constant_values=NEG)
    w_zy = jnp.concatenate([w_z, w_y], axis=1)            # (Hp, 2*Lp) fused heads
    b_zy = jnp.concatenate([b_z, b_y], axis=1)            # (1, 2*Lp)

    w_p = jnp.pad(w_p, ((0, Lp - latent), (0, Cp - n_classes)))
    b_p = jnp.pad(b_p, ((0, 0), (0, Cp - n_classes)), constant_values=NEG)

    xp = jnp.pad(x, ((0, Bp - B), (0, Dp - D))).astype(compute_dtype)

    # bf16 weights for MXU; biases stay f32 (added after f32 accumulation)
    w_in = w_in.astype(compute_dtype)
    w_zy = w_zy.astype(compute_dtype)
    w_p = w_p.astype(compute_dtype)
    b_in = b_in.astype(jnp.float32)
    b_zy = b_zy.astype(jnp.float32)
    b_p = b_p.astype(jnp.float32)

    grid = (Bp // TB, n_layers + 1)

    # ---- specs & args (skip the hidden-weight DMA entirely when n_layers == 0) ----
    in_specs = [
        pl.BlockSpec((TB, Dp), lambda b, l: (b, 0)),                 # x
        pl.BlockSpec((Dp, Hp), lambda b, l: (0, 0)),                 # w_in
        pl.BlockSpec((1, Hp), lambda b, l: (0, 0)),                  # b_in
    ]
    args = [xp, w_in, b_in]

    if n_layers > 0:
        w_h = jnp.pad(w_h, ((0, 0), (0, Hp - H), (0, Hp - H))).astype(compute_dtype)
        b_h = jnp.pad(b_h, ((0, 0), (0, 0), (0, Hp - H))).astype(jnp.float32)
        if pinned:
            # Whole stack resident in VMEM: read from HBM exactly once.
            in_specs += [
                pl.BlockSpec((n_layers, Hp, Hp), lambda b, l: (0, 0, 0)),
                pl.BlockSpec((n_layers, 1, Hp), lambda b, l: (0, 0, 0)),
            ]
        else:
            # Streamed per layer; layer l+1 DMA overlaps layer l compute.
            in_specs += [
                pl.BlockSpec((1, Hp, Hp), lambda b, l: (jnp.maximum(l - 1, 0), 0, 0)),
                pl.BlockSpec((1, 1, Hp), lambda b, l: (jnp.maximum(l - 1, 0), 0, 0)),
            ]
        args += [w_h, b_h]

    in_specs += [
        pl.BlockSpec((Hp, 2 * Lp), lambda b, l: (0, 0)),             # w_zy (fused)
        pl.BlockSpec((1, 2 * Lp), lambda b, l: (0, 0)),              # b_zy
        pl.BlockSpec((Lp, Cp), lambda b, l: (0, 0)),                 # w_p
        pl.BlockSpec((1, Cp), lambda b, l: (0, 0)),                  # b_p
    ]
    args += [w_zy, b_zy, w_p, b_p]

    grid_spec = pltpu.PrefetchScalarGridSpec(
        num_scalar_prefetch=0,
        grid=grid,
        in_specs=in_specs,
        out_specs=(
            pl.BlockSpec((TB, Lp), lambda b, l: (b, 0)),             # z
            pl.BlockSpec((TB, Lp), lambda b, l: (b, 0)),             # _y
            pl.BlockSpec((TB, Cp), lambda b, l: (b, 0)),             # y_
        ),
        scratch_shapes=[pltpu.VMEM((TB, Hp), compute_dtype)],        # running h
    )

    kernel = _make_encoder_kernel(has_hidden=(n_layers > 0), pinned=pinned)

    z, y, yp = pl.pallas_call(
        kernel,
        grid_spec=grid_spec,
        out_shape=(
            jax.ShapeDtypeStruct((Bp, Lp), jnp.float32),
            jax.ShapeDtypeStruct((Bp, Lp), jnp.float32),
            jax.ShapeDtypeStruct((Bp, Cp), jnp.float32),
        ),
        compiler_params=pltpu.CompilerParams(
            dimension_semantics=("parallel", "arbitrary"),
            vmem_limit_bytes=int(vmem_cap),
        ),
    )(*args)

    return z[:B, :latent], y[:B, :latent], yp[:B, :n_classes]


# ----------------------------------------------------------------------------
# Parameters + pure-JAX reference (unfolded, f32) for a sanity check
# ----------------------------------------------------------------------------
def init_params(key, input_dim, hidden_dim, latent_dim, n_classes, n_layers):
    """Deterministic synthetic parameter initialization (not a checkpoint load)."""
    ks = jax.random.split(key, 16)
    u = lambda k, shape, s=0.2: jax.random.uniform(k, shape, jnp.float32, -s, s)
    L = max(n_layers, 1)
    return {
        "w_in": u(ks[0], (input_dim, hidden_dim)),
        "b_in": u(ks[1], (1, hidden_dim)),
        "g_in": 1.0 + u(ks[2], (1, hidden_dim)),
        "be_in": u(ks[3], (1, hidden_dim)),
        "mu_in": u(ks[4], (1, hidden_dim)),
        "var_in": 0.5 + jnp.abs(u(ks[5], (1, hidden_dim))),
        "w_h": u(ks[6], (L, hidden_dim, hidden_dim)),
        "b_h": u(ks[7], (L, 1, hidden_dim)),
        "g_h": 1.0 + u(ks[8], (L, 1, hidden_dim)),
        "be_h": u(ks[9], (L, 1, hidden_dim)),
        "mu_h": u(ks[10], (L, 1, hidden_dim)),
        "var_h": 0.5 + jnp.abs(u(ks[11], (L, 1, hidden_dim))),
        "w_z": u(ks[12], (hidden_dim, latent_dim)),
        "b_z": u(ks[13], (1, latent_dim)),
        "w_y": u(ks[14], (hidden_dim, latent_dim)),
        "b_y": u(ks[15], (1, latent_dim)),
        "w_p": u(jax.random.fold_in(key, 100), (latent_dim, n_classes)),
        "b_p": u(jax.random.fold_in(key, 101), (1, n_classes)),
    }


def encoder_reference(x, params, n_layers):
    def bn(a, g, be, mu, var):
        return (a - mu) * jax.lax.rsqrt(var + BN_EPS) * g + be

    h = jnp.maximum(x @ params["w_in"] + params["b_in"], 0.0)
    h = bn(h, params["g_in"], params["be_in"], params["mu_in"], params["var_in"])
    for i in range(n_layers):
        h = jnp.maximum(h @ params["w_h"][i] + params["b_h"][i], 0.0)
        h = bn(h, params["g_h"][i], params["be_h"][i],
               params["mu_h"][i], params["var_h"][i])
    z = h @ params["w_z"] + params["b_z"]
    y = jax.nn.softmax(h @ params["w_y"] + params["b_y"], axis=-1)
    yp = jax.nn.softmax(y @ params["w_p"] + params["b_p"], axis=-1)
    return z, y, yp


if __name__ == "__main__":
    batch, input_dim, hidden_dim, latent_dim, n_classes = 8, 32, 16, 8, 4
    n_layers = 2

    key = jax.random.PRNGKey(0)
    k_x, k_p = jax.random.split(key)
    x = jax.random.normal(k_x, (batch, input_dim), jnp.float32)
    params = init_params(k_p, input_dim, hidden_dim, latent_dim, n_classes, n_layers)

    z, _y, y_ = encoder_forward(x, params, n_layers)
    jax.block_until_ready((z, _y, y_))

    assert z.shape == (batch, latent_dim)
    assert _y.shape == (batch, latent_dim)
    assert y_.shape == (batch, n_classes)

    # Loose tolerance: bf16 weights/activations with f32 accumulation + approx recip.
    z_r, y_r, yp_r = encoder_reference(x, params, n_layers)
    assert float(jnp.max(jnp.abs(z - z_r))) < 5e-2
    assert float(jnp.max(jnp.abs(_y - y_r))) < 5e-2
    assert float(jnp.max(jnp.abs(y_ - yp_r))) < 5e-2

    print("KERNEL_OK")
</pallas_src>

<mosaic_0001>
module attributes {stable_mosaic.version = 11 : i64} {
  func.func @kernel(%arg0: i32, %arg1: i32, %arg2: memref<8x128xbf16, #tpu.memory_space<vmem>>, %arg3: memref<128x128xbf16, #tpu.memory_space<vmem>>, %arg4: memref<1x128xf32, #tpu.memory_space<vmem>>, %arg5: memref<2x128x128xbf16, #tpu.memory_space<vmem>>, %arg6: memref<2x1x128xf32, #tpu.memory_space<vmem>>, %arg7: memref<128x256xbf16, #tpu.memory_space<vmem>>, %arg8: memref<1x256xf32, #tpu.memory_space<vmem>>, %arg9: memref<128x128xbf16, #tpu.memory_space<vmem>>, %arg10: memref<1x128xf32, #tpu.memory_space<vmem>>, %arg11: memref<8x128xf32, #tpu.memory_space<vmem>>, %arg12: memref<8x128xf32, #tpu.memory_space<vmem>>, %arg13: memref<8x128xf32, #tpu.memory_space<vmem>>, %arg14: memref<8x128xbf16, #tpu.memory_space<vmem>>) attributes {dimension_semantics = [#tpu.dimension_semantics<parallel>, #tpu.dimension_semantics<arbitrary>], iteration_bounds = array<i64: 1, 3>, scalar_prefetch = 0 : i64, scratch_operands = 1 : i64, tpu.core_type = #tpu.core_type<tc>, window_params = [{transform_indices = @transform_0, window_bounds = array<i64: 8, 128>}, {pipeline_mode = #tpu.pipeline_mode<synchronous>, transform_indices = @transform_1, window_bounds = array<i64: 128, 128>}, {pipeline_mode = #tpu.pipeline_mode<synchronous>, transform_indices = @transform_2, window_bounds = array<i64: 1, 128>}, {pipeline_mode = #tpu.pipeline_mode<synchronous>, transform_indices = @transform_3, window_bounds = array<i64: 2, 128, 128>}, {pipeline_mode = #tpu.pipeline_mode<synchronous>, transform_indices = @transform_4, window_bounds = array<i64: 2, 1, 128>}, {pipeline_mode = #tpu.pipeline_mode<synchronous>, transform_indices = @transform_5, window_bounds = array<i64: 128, 256>}, {pipeline_mode = #tpu.pipeline_mode<synchronous>, transform_indices = @transform_6, window_bounds = array<i64: 1, 256>}, {pipeline_mode = #tpu.pipeline_mode<synchronous>, transform_indices = @transform_7, window_bounds = array<i64: 128, 128>}, {pipeline_mode = #tpu.pipeline_mode<synchronous>, transform_indices = @transform_8, window_bounds = array<i64: 1, 128>}, {transform_indices = @transform_9, window_bounds = array<i64: 8, 128>}, {transform_indices = @transform_10, window_bounds = array<i64: 8, 128>}, {transform_indices = @transform_11, window_bounds = array<i64: 8, 128>}]} {
    %c0_i32 = arith.constant 0 : i32
    %0 = arith.cmpi eq, %arg1, %c0_i32 : i32
    %1 = arith.extui %0 : i1 to i32
    %c0_i32_0 = arith.constant 0 : i32
    %2 = arith.cmpi ne, %1, %c0_i32_0 : i32
    scf.if %2 {
      %c0 = arith.constant 0 : index
      %c0_4 = arith.constant 0 : index
      %9 = vector.load %arg2[%c0, %c0_4] : memref<8x128xbf16, #tpu.memory_space<vmem>>, vector<8x128xbf16>
      %c0_5 = arith.constant 0 : index
      %c0_6 = arith.constant 0 : index
      %10 = vector.load %arg3[%c0_5, %c0_6] : memref<128x128xbf16, #tpu.memory_space<vmem>>, vector<128x128xbf16>
      %cst = arith.constant dense<0.000000e+00> : vector<8x128xf32>
      %11 = tpu.matmul %9, %10, %cst {dimension_numbers = #tpu.dot_dimension_numbers<[1], [0], [0], [1], [0, 0, 1, 1], [], []>} : vector<8x128xbf16>, vector<128x128xbf16>, vector<8x128xf32> -> vector<8x128xf32>
      %c0_7 = arith.constant 0 : index
      %c0_8 = arith.constant 0 : index
      %12 = vector.load %arg4[%c0_7, %c0_8] : memref<1x128xf32, #tpu.memory_space<vmem>>, vector<1x128xf32>
      %13 = vector.broadcast %12 : vector<1x128xf32> to vector<8x128xf32>
      %14 = arith.addf %11, %13 : vector<8x128xf32>
      %cst_9 = arith.constant 0.000000e+00 : f32
      %15 = vector.broadcast %cst_9 : f32 to vector<8x128xf32>
      %16 = arith.maximumf %14, %15 : vector<8x128xf32>
      %17 = arith.truncf %16 : vector<8x128xf32> to vector<8x128xbf16>
      %c0_10 = arith.constant 0 : index
      %c0_11 = arith.constant 0 : index
      %18 = vector.load %arg14[%c0_10, %c0_11] : memref<8x128xbf16, #tpu.memory_space<vmem>>, vector<8x128xbf16>
      tpu.vector_store %arg14[%c0_10, %c0_11], %17 {strides = array<i32>} : memref<8x128xbf16, #tpu.memory_space<vmem>>, vector<8x128xbf16>,
    } else {
    }
    %c0_i32_1 = arith.constant 0 : i32
    %3 = arith.cmpi sgt, %arg1, %c0_i32_1 : i32
    %4 = arith.extui %3 : i1 to i32
    %c0_i32_2 = arith.constant 0 : i32
    %5 = arith.cmpi ne, %4, %c0_i32_2 : i32
    scf.if %5 {
      %c1_i32 = arith.constant 1 : i32
      %9 = arith.subi %arg1, %c1_i32 : i32
      %c0_i32_4 = arith.constant 0 : i32
      %10 = arith.maxsi %9, %c0_i32_4 : i32
      %c0 = arith.constant 0 : index
      %c0_5 = arith.constant 0 : index
      %11 = vector.load %arg14[%c0, %c0_5] : memref<8x128xbf16, #tpu.memory_space<vmem>>, vector<8x128xbf16>
      %12 = arith.index_cast %10 : i32 to index
      %c0_6 = arith.constant 0 : index
      %c0_7 = arith.constant 0 : index
      %13 = vector.load %arg5[%12, %c0_6, %c0_7] : memref<2x128x128xbf16, #tpu.memory_space<vmem>>, vector<1x128x128xbf16>
      %14 = vector.shape_cast %13 : vector<1x128x128xbf16> to vector<128x128xbf16>
      %cst = arith.constant dense<0.000000e+00> : vector<8x128xf32>
      %15 = tpu.matmul %11, %14, %cst {dimension_numbers = #tpu.dot_dimension_numbers<[1], [0], [0], [1], [0, 0, 1, 1], [], []>} : vector<8x128xbf16>, vector<128x128xbf16>, vector<8x128xf32> -> vector<8x128xf32>
      %16 = arith.index_cast %10 : i32 to index
      %c0_8 = arith.constant 0 : index
      %c0_9 = arith.constant 0 : index
      %17 = vector.load %arg6[%16, %c0_8, %c0_9] : memref<2x1x128xf32, #tpu.memory_space<vmem>>, vector<1x1x128xf32>
      %18 = vector.shape_cast %17 : vector<1x1x128xf32> to vector<1x128xf32>
      %19 = vector.broadcast %18 : vector<1x128xf32> to vector<8x128xf32>
      %20 = arith.addf %15, %19 : vector<8x128xf32>
      %cst_10 = arith.constant 0.000000e+00 : f32
      %21 = vector.broadcast %cst_10 : f32 to vector<8x128xf32>
      %22 = arith.maximumf %20, %21 : vector<8x128xf32>
      %23 = arith.truncf %22 : vector<8x128xf32> to vector<8x128xbf16>
      %c0_11 = arith.constant 0 : index
      %c0_12 = arith.constant 0 : index
      %24 = vector.load %arg14[%c0_11, %c0_12] : memref<8x128xbf16, #tpu.memory_space<vmem>>, vector<8x128xbf16>
      tpu.vector_store %arg14[%c0_11, %c0_12], %23 {strides = array<i32>} : memref<8x128xbf16, #tpu.memory_space<vmem>>, vector<8x128xbf16>,
    } else {
    }
    %c2_i32 = arith.constant 2 : i32
    %6 = arith.cmpi eq, %arg1, %c2_i32 : i32
    %7 = arith.extui %6 : i1 to i32
    %c0_i32_3 = arith.constant 0 : i32
    %8 = arith.cmpi ne, %7, %c0_i32_3 : i32
    scf.if %8 {
      %c0 = arith.constant 0 : index
      %c0_4 = arith.constant 0 : index
      %9 = vector.load %arg14[%c0, %c0_4] : memref<8x128xbf16, #tpu.memory_space<vmem>>, vector<8x128xbf16>
      %c0_5 = arith.constant 0 : index
      %c0_6 = arith.constant 0 : index
      %10 = vector.load %arg7[%c0_5, %c0_6] : memref<128x256xbf16, #tpu.memory_space<vmem>>, vector<128x256xbf16>
      %cst = arith.constant dense<0.000000e+00> : vector<8x256xf32>
      %11 = tpu.matmul %9, %10, %cst {dimension_numbers = #tpu.dot_dimension_numbers<[1], [0], [0], [1], [0, 0, 1, 1], [], []>} : vector<8x128xbf16>, vector<128x256xbf16>, vector<8x256xf32> -> vector<8x256xf32>
      %c0_7 = arith.constant 0 : index
      %c0_8 = arith.constant 0 : index
      %12 = vector.load %arg8[%c0_7, %c0_8] : memref<1x256xf32, #tpu.memory_space<vmem>>, vector<1x256xf32>
      %13 = vector.broadcast %12 : vector<1x256xf32> to vector<8x256xf32>
      %14 = arith.addf %11, %13 : vector<8x256xf32>
      %15 = vector.extract_strided_slice %14 {offsets = [0, 0], sizes = [8, 128], strides = [1, 1]} : vector<8x256xf32> to vector<8x128xf32>
      %16 = vector.extract_strided_slice %14 {offsets = [0, 128], sizes = [8, 128], strides = [1, 1]} : vector<8x256xf32> to vector<8x128xf32>
      %cst_9 = arith.constant dense<0xFF800000> : vector<8xf32>
      %17 = vector.multi_reduction <maximumf>, %16, %cst_9 [1] : vector<8x128xf32> to vector<8xf32>
      %18 = vector.shape_cast %17 : vector<8xf32> to vector<8x1xf32>
      %19 = vector.broadcast %18 : vector<8x1xf32> to vector<8x128xf32>
      %20 = arith.subf %16, %19 : vector<8x128xf32>
      %21 = math.exp %20 : vector<8x128xf32>
      %cst_10 = arith.constant dense<0.000000e+00> : vector<8xf32>
      %22 = vector.multi_reduction <add>, %21, %cst_10 [1] : vector<8x128xf32> to vector<8xf32>
      %23 = vector.shape_cast %22 : vector<8xf32> to vector<8x1xf32>
      %24 = tpu.reciprocal %23 {approx = true} : vector<8x1xf32> -> vector<8x1xf32>
      %25 = vector.broadcast %24 : vector<8x1xf32> to vector<8x128xf32>
      %26 = arith.mulf %21, %25 : vector<8x128xf32>
      %27 = arith.truncf %26 : vector<8x128xf32> to vector<8x128xbf16>
      %c0_11 = arith.constant 0 : index
      %c0_12 = arith.constant 0 : index
      %28 = vector.load %arg9[%c0_11, %c0_12] : memref<128x128xbf16, #tpu.memory_space<vmem>>, vector<128x128xbf16>
      %cst_13 = arith.constant dense<0.000000e+00> : vector<8x128xf32>
      %29 = tpu.matmul %27, %28, %cst_13 {dimension_numbers = #tpu.dot_dimension_numbers<[1], [0], [0], [1], [0, 0, 1, 1], [], []>} : vector<8x128xbf16>, vector<128x128xbf16>, vector<8x128xf32> -> vector<8x128xf32>
      %c0_14 = arith.constant 0 : index
      %c0_15 = arith.constant 0 : index
      %30 = vector.load %arg10[%c0_14, %c0_15] : memref<1x128xf32, #tpu.memory_space<vmem>>, vector<1x128xf32>
      %31 = vector.broadcast %30 : vector<1x128xf32> to vector<8x128xf32>
      %32 = arith.addf %29, %31 : vector<8x128xf32>
      %cst_16 = arith.constant dense<0xFF800000> : vector<8xf32>
      %33 = vector.multi_reduction <maximumf>, %32, %cst_16 [1] : vector<8x128xf32> to vector<8xf32>
      %34 = vector.shape_cast %33 : vector<8xf32> to vector<8x1xf32>
      %35 = vector.broadcast %34 : vector<8x1xf32> to vector<8x128xf32>
      %36 = arith.subf %32, %35 : vector<8x128xf32>
      %37 = math.exp %36 : vector<8x128xf32>
      %cst_17 = arith.constant dense<0.000000e+00> : vector<8xf32>
      %38 = vector.multi_reduction <add>, %37, %cst_17 [1] : vector<8x128xf32> to vector<8xf32>
      %39 = vector.shape_cast %38 : vector<8xf32> to vector<8x1xf32>
      %40 = tpu.reciprocal %39 {approx = true} : vector<8x1xf32> -> vector<8x1xf32>
      %41 = vector.broadcast %40 : vector<8x1xf32> to vector<8x128xf32>
      %42 = arith.mulf %37, %41 : vector<8x128xf32>
      %c0_18 = arith.constant 0 : index
      %c0_19 = arith.constant 0 : index
      %43 = vector.load %arg11[%c0_18, %c0_19] : memref<8x128xf32, #tpu.memory_space<vmem>>, vector<8x128xf32>
      tpu.vector_store %arg11[%c0_18, %c0_19], %15 {strides = array<i32>} : memref<8x128xf32, #tpu.memory_space<vmem>>, vector<8x128xf32>,
      %c0_20 = arith.constant 0 : index
      %c0_21 = arith.constant 0 : index
      %44 = vector.load %arg12[%c0_20, %c0_21] : memref<8x128xf32, #tpu.memory_space<vmem>>, vector<8x128xf32>
      tpu.vector_store %arg12[%c0_20, %c0_21], %26 {strides = array<i32>} : memref<8x128xf32, #tpu.memory_space<vmem>>, vector<8x128xf32>,
      %c0_22 = arith.constant 0 : index
      %c0_23 = arith.constant 0 : index
      %45 = vector.load %arg13[%c0_22, %c0_23] : memref<8x128xf32, #tpu.memory_space<vmem>>, vector<8x128xf32>
      tpu.vector_store %arg13[%c0_22, %c0_23], %42 {strides = array<i32>} : memref<8x128xf32, #tpu.memory_space<vmem>>, vector<8x128xf32>,
    } else {
    }
    return
  }
  func.func @transform_0(%arg0: i32, %arg1: i32) -> (i32, i32) {
    %c0_i32 = arith.constant 0 : i32
    %c0_i32_0 = arith.constant 0 : i32
    return %arg0, %c0_i32 : i32, i32
  }
  func.func @transform_1(%arg0: i32, %arg1: i32) -> (i32, i32) {
    %c0_i32 = arith.constant 0 : i32
    %c0_i32_0 = arith.constant 0 : i32
    %c0_i32_1 = arith.constant 0 : i32
    return %c0_i32, %c0_i32_0 : i32, i32
  }
  func.func @transform_2(%arg0: i32, %arg1: i32) -> (i32, i32) {
    %c0_i32 = arith.constant 0 : i32
    %c0_i32_0 = arith.constant 0 : i32
    %c0_i32_1 = arith.constant 0 : i32
    return %c0_i32, %c0_i32_0 : i32, i32
  }
  func.func @transform_3(%arg0: i32, %arg1: i32) -> (i32, i32, i32) {
    %c0_i32 = arith.constant 0 : i32
    %c0_i32_0 = arith.constant 0 : i32
    %c0_i32_1 = arith.constant 0 : i32
    %c0_i32_2 = arith.constant 0 : i32
    return %c0_i32, %c0_i32_0, %c0_i32_1 : i32, i32, i32
  }
  func.func @transform_4(%arg0: i32, %arg1: i32) -> (i32, i32, i32) {
    %c0_i32 = arith.constant 0 : i32
    %c0_i32_0 = arith.constant 0 : i32
    %c0_i32_1 = arith.constant 0 : i32
    %c0_i32_2 = arith.constant 0 : i32
    return %c0_i32, %c0_i32_0, %c0_i32_1 : i32, i32, i32
  }
  func.func @transform_5(%arg0: i32, %arg1: i32) -> (i32, i32) {
    %c0_i32 = arith.constant 0 : i32
    %c0_i32_0 = arith.constant 0 : i32
    %c0_i32_1 = arith.constant 0 : i32
    return %c0_i32, %c0_i32_0 : i32, i32
  }
  func.func @transform_6(%arg0: i32, %arg1: i32) -> (i32, i32) {
    %c0_i32 = arith.constant 0 : i32
    %c0_i32_0 = arith.constant 0 : i32
    %c0_i32_1 = arith.constant 0 : i32
    return %c0_i32, %c0_i32_0 : i32, i32
  }
  func.func @transform_7(%arg0: i32, %arg1: i32) -> (i32, i32) {
    %c0_i32 = arith.constant 0 : i32
    %c0_i32_0 = arith.constant 0 : i32
    %c0_i32_1 = arith.constant 0 : i32
    return %c0_i32, %c0_i32_0 : i32, i32
  }
  func.func @transform_8(%arg0: i32, %arg1: i32) -> (i32, i32) {
    %c0_i32 = arith.constant 0 : i32
    %c0_i32_0 = arith.constant 0 : i32
    %c0_i32_1 = arith.constant 0 : i32
    return %c0_i32, %c0_i32_0 : i32, i32
  }
  func.func @transform_9(%arg0: i32, %arg1: i32) -> (i32, i32) {
    %c0_i32 = arith.constant 0 : i32
    %c0_i32_0 = arith.constant 0 : i32
    return %arg0, %c0_i32 : i32, i32
  }
  func.func @transform_10(%arg0: i32, %arg1: i32) -> (i32, i32) {
    %c0_i32 = arith.constant 0 : i32
    %c0_i32_0 = arith.constant 0 : i32
    return %arg0, %c0_i32 : i32, i32
  }
  func.func @transform_11(%arg0: i32, %arg1: i32) -> (i32, i32) {
    %c0_i32 = arith.constant 0 : i32
    %c0_i32_0 = arith.constant 0 : i32
    return %arg0, %c0_i32 : i32, i32
  }
}

</mosaic_0001>

<llo_original>
// kernel: tpu_custom_call.1
$region0: #{tpu_custom_call.1}
  #allocation0 [shape = 'u32[]', space=smem, size = 0x4, offset = 0x4, fixed_abs, tag = 'smem constant byte address 0x4 - core index']
  #allocation1 [shape = 'u32[144,128]{1,0:T(1,128)}', space=vmem, size = 0x12000, scoped, tag = 'internal scratch']
  #allocation2 [shape = 'bf16[8,128]{1,0:T(8,128)(2,1)}', space=vmem, size = 0x800, scoped, tag = 'scratch operand']
  %s0 = inlined_call_operand.hbm [shape: bf16[8,128], index: 0, kind: input, shape index: {}]
  %s1 = inlined_call_operand.hbm [shape: bf16[128,128], index: 1, kind: input, shape index: {}]
  %s2 = inlined_call_operand.vmem [shape: f32[1,128], index: 2, kind: input, shape index: {}]
  %s3 = inlined_call_operand.hbm [shape: bf16[2,128,128], index: 3, kind: input, shape index: {}]
  %s4 = inlined_call_operand.vmem [shape: f32[2,1,128], index: 4, kind: input, shape index: {}]
  %s5 = inlined_call_operand.hbm [shape: bf16[128,256], index: 5, kind: input, shape index: {}]
  %s6 = inlined_call_operand.vmem [shape: f32[1,256], index: 6, kind: input, shape index: {}]
  %s7 = inlined_call_operand.hbm [shape: bf16[128,128], index: 7, kind: input, shape index: {}]
  %s8 = inlined_call_operand.vmem [shape: f32[1,128], index: 8, kind: input, shape index: {}]
  %s9 = inlined_call_operand.hbm [shape: f32[8,128], index: 9, kind: output, shape index: {0}]
  %s10 = inlined_call_operand.hbm [shape: f32[8,128], index: 10, kind: output, shape index: {1}]
  %s11 = inlined_call_operand.hbm [shape: f32[8,128], index: 11, kind: output, shape index: {2}]
  %12 = xla_tuple %s9, %s10, %s11
  %s13 = sld [smem:[#allocation0]]
  $region117: #{tpu_custom_call.1} parent=0
    _
  %s15 = ssub.s32 1, %s13
  %s16 = scalar_select 0, %s15, %s13
  $region1: #{tpu_custom_call.1} parent=0
    #allocation3 [shape = 'u8[2048]{0}', space=vmem, size = 0x800, scoped, tag = 'input window, operand 0, single buffered']
    #allocation4 [shape = 's32[2]{0}', space=sflag, size = 0x8, scoped, tag = 'scoped memory for tpu_custom_call.1']
    #allocation5 [shape = 's32[2]{0}', space=sflag, size = 0x8, scoped, tag = 'scoped memory for tpu_custom_call.1']
    #allocation6 [shape = 'u8[32768]{0}', space=vmem, size = 0x8000, scoped, tag = 'input window, operand 1, single buffered']
    #allocation7 [shape = 's32[1]{0}', space=sflag, size = 0x4, scoped, tag = 'scoped memory for tpu_custom_call.1']
    #allocation8 [shape = 'u8[65536]{0}', space=vmem, size = 0x10000, scoped, tag = 'input window, operand 3, single buffered']
    #allocation9 [shape = 'u8[65536]{0}', space=vmem, size = 0x10000, scoped, tag = 'input window, operand 5, single buffered']
    #allocation10 [shape = 's32[1]{0}', space=sflag, size = 0x4, scoped, tag = 'scoped memory for tpu_custom_call.1']
    #allocation11 [shape = 'u8[32768]{0}', space=vmem, size = 0x8000, scoped, tag = 'input window, operand 7, single buffered']
    #allocation12 [shape = 'u8[4096]{0}', space=vmem, size = 0x1000, scoped, tag = 'output window, operand 0, single buffered']
    #allocation13 [shape = 'u8[4096]{0}', space=vmem, size = 0x1000, scoped, tag = 'output window, operand 1, single buffered']
    #allocation14 [shape = 's32[1]{0}', space=sflag, size = 0x4, scoped, tag = 'scoped memory for tpu_custom_call.1']
    #allocation15 [shape = 'u8[4096]{0}', space=vmem, size = 0x1000, scoped, tag = 'output window, operand 2, single buffered']
    %17 = vsyncpa [#allocation4], 0
    %18 = vsyncpa [#allocation7], 0
    %19 = vsyncpa [#allocation10], 0
    %20 = vsyncpa [#allocation5], 0
    %21 = vsyncpa [#allocation14], 0
    loop: start=0, step=1, limit=5
    $region2: #{tpu_custom_call.1} parent=1 // loop_pre_header
      _
    $region3: #{tpu_custom_call.1} parent=1 // loop_header
      %s23 = sphi 0, %s27
      %p24 = scmp.ge.s32.totalorder %s23, 5
      %s30 = sphi 0, %s42
      %s31 = sphi 0, %s38
      %s32 = sphi 0, %s30
      %s33 = sphi 0, %s31
      %s34 = sphi 0, %s32
      %s35 = sphi 0, %s33
      %s45 = sphi 0, %s47
      %s48 = sphi 0, %s45
      %s49 = sphi 0, %s48
      %s65 = sphi 0, %s49
      %s69 = sphi 0, %s69
      %s71 = sphi 0, %s69
      %s72 = sphi 0, %s71
      %s86 = sphi 0, %s72
      %s90 = sphi 0, %s90
      %s92 = sphi 0, %s90
      %s93 = sphi 0, %s92
      %s107 = sphi 0, %s93
      %s111 = sphi 0, %s111
      %s113 = sphi 0, %s111
      %s114 = sphi 0, %s113
      %s128 = sphi 0, %s114
      %s132 = sphi 0, %s132
      %s134 = sphi 0, %s132
      %s135 = sphi 0, %s134
      %s149 = sphi 0, %s135
      %s153 = sphi 0, %s153
      %s155 = sphi 0, %s153
      %s156 = sphi 0, %s155
      %s170 = sphi 0, %s156
      %s174 = sphi 0, %s174
      %s176 = sphi 0, %s174
      %s177 = sphi 0, %s176
      %s191 = sphi 0, %s177
      %s195 = sphi 0, %s195
      %s197 = sphi 0, %s195
      %s198 = sphi 0, %s197
      %s212 = sphi 0, %s198
      %s216 = sphi 0, %s216
      %s218 = sphi 0, %s216
      %s219 = sphi 0, %s218
      %s233 = sphi 0, %s219
      %s239 = sphi 0, %s241
      %s242 = sphi 0, %s239
      %s243 = sphi 0, %s242
      %s259 = sphi 0, %s243
      %s265 = sphi 0, %s267
      %s268 = sphi 0, %s265
      %s269 = sphi 0, %s268
      %s285 = sphi 0, %s269
      %s291 = sphi 0, %s293
      %s294 = sphi 0, %s291
      %s295 = sphi 0, %s294
      %s311 = sphi 0, %s295
    $region4: #{tpu_custom_call.1} parent=1 // loop_header_branch
      %26 = sbr.rel (%p24) target = $region8
    $region5: #{tpu_custom_call.1} parent=1 // loop_body
      %s28 = ssub.s32 %s23, 1
      %s29 = ssub.s32 %s23, 2
      %s36 = sadd.s32 1, %s31
      %p37 = scmp.ge.s32.totalorder %s36, 3
      %s38 = scalar_select %p37, 0, %s36
      %s39 = sadd.s32 1, %s30
      %s40 = scalar_select %p37, %s39, %s30
      %p41 = scmp.ge.s32.totalorder %s40, 1
      %s42 = scalar_select %p41, 0, %s40
      %s43 = ssub.s32 %s30, %s42
      %p44 = scmp.eq.s32.totalorder %s43, 0
      %s46 = sadd.s32 %s45, 1
      %s47 = scalar_select %p44, %s45, %s46
      %p50 = pneg %p44
      %p51 = scmp.eq.s32.totalorder %s23, 2
      %p52 = por %p50, %p51
      %p53 = scmp.ne.s32.totalorder %s45, %s48
      %p54 = scmp.eq.s32.totalorder %s23, 0
      %p55 = por %p53, %p54
      %p56 = scmp.ne.s32.totalorder %s45, %s48
      %p57 = scmp.eq.s32.totalorder %s28, 2
      %p58 = por %p56, %p57
      %p59 = scmp.ne.s32.totalorder %s48, %s49
      %p60 = scmp.eq.s32.totalorder %s28, 0
      %p61 = por %p59, %p60
      %p62 = scmp.ne.s32.totalorder %s48, %s49
      %p63 = scmp.eq.s32.totalorder %s29, 2
      %p64 = por %p62, %p63
      %p66 = scmp.ne.s32.totalorder %s49, %s65
      %p67 = scmp.eq.s32.totalorder %s29, 0
      %p68 = por %p66, %p67
      %s70 = sadd.s32 %s69, 1
      %p73 = scmp.eq.s32.totalorder %s23, 2
      %p74 = scmp.ne.s32.totalorder %s69, %s71
      %p75 = scmp.eq.s32.totalorder %s23, 0
      %p76 = por %p74, %p75
      %p77 = scmp.ne.s32.totalorder %s69, %s71
      %p78 = scmp.eq.s32.totalorder %s28, 2
      %p79 = por %p77, %p78
      %p80 = scmp.ne.s32.totalorder %s71, %s72
      %p81 = scmp.eq.s32.totalorder %s28, 0
      %p82 = por %p80, %p81
      %p83 = scmp.ne.s32.totalorder %s71, %s72
      %p84 = scmp.eq.s32.totalorder %s29, 2
      %p85 = por %p83, %p84
      %p87 = scmp.ne.s32.totalorder %s72, %s86
      %p88 = scmp.eq.s32.totalorder %s29, 0
      %p89 = por %p87, %p88
      %s91 = sadd.s32 %s90, 1
      %p94 = scmp.eq.s32.totalorder %s23, 2
      %p95 = scmp.ne.s32.totalorder %s90, %s92
      %p96 = scmp.eq.s32.totalorder %s23, 0
      %p97 = por %p95, %p96
      %p98 = scmp.ne.s32.totalorder %s90, %s92
      %p99 = scmp.eq.s32.totalorder %s28, 2
      %p100 = por %p98, %p99
      %p101 = scmp.ne.s32.totalorder %s92, %s93
      %p102 = scmp.eq.s32.totalorder %s28, 0
      %p103 = por %p101, %p102
      %p104 = scmp.ne.s32.totalorder %s92, %s93
      %p105 = scmp.eq.s32.totalorder %s29, 2
      %p106 = por %p104, %p105
      %p108 = scmp.ne.s32.totalorder %s93, %s107
      %p109 = scmp.eq.s32.totalorder %s29, 0
      %p110 = por %p108, %p109
      %s112 = sadd.s32 %s111, 1
      %p115 = scmp.eq.s32.totalorder %s23, 2
      %p116 = scmp.ne.s32.totalorder %s111, %s113
      %p117 = scmp.eq.s32.totalorder %s23, 0
      %p118 = por %p116, %p117
      %p119 = scmp.ne.s32.totalorder %s111, %s113
      %p120 = scmp.eq.s32.totalorder %s28, 2
      %p121 = por %p119, %p120
      %p122 = scmp.ne.s32.totalorder %s113, %s114
      %p123 = scmp.eq.s32.totalorder %s28, 0
      %p124 = por %p122, %p123
      %p125 = scmp.ne.s32.totalorder %s113, %s114
      %p126 = scmp.eq.s32.totalorder %s29, 2
      %p127 = por %p125, %p126
      %p129 = scmp.ne.s32.totalorder %s114, %s128
      %p130 = scmp.eq.s32.totalorder %s29, 0
      %p131 = por %p129, %p130
      %s133 = sadd.s32 %s132, 1
      %p136 = scmp.eq.s32.totalorder %s23, 2
      %p137 = scmp.ne.s32.totalorder %s132, %s134
      %p138 = scmp.eq.s32.totalorder %s23, 0
      %p139 = por %p137, %p138
      %p140 = scmp.ne.s32.totalorder %s132, %s134
      %p141 = scmp.eq.s32.totalorder %s28, 2
      %p142 = por %p140, %p141
      %p143 = scmp.ne.s32.totalorder %s134, %s135
      %p144 = scmp.eq.s32.totalorder %s28, 0
      %p145 = por %p143, %p144
      %p146 = scmp.ne.s32.totalorder %s134, %s135
      %p147 = scmp.eq.s32.totalorder %s29, 2
      %p148 = por %p146, %p147
      %p150 = scmp.ne.s32.totalorder %s135, %s149
      %p151 = scmp.eq.s32.totalorder %s29, 0
      %p152 = por %p150, %p151
      %s154 = sadd.s32 %s153, 1
      %p157 = scmp.eq.s32.totalorder %s23, 2
      %p158 = scmp.ne.s32.totalorder %s153, %s155
      %p159 = scmp.eq.s32.totalorder %s23, 0
      %p160 = por %p158, %p159
      %p161 = scmp.ne.s32.totalorder %s153, %s155
      %p162 = scmp.eq.s32.totalorder %s28, 2
      %p163 = por %p161, %p162
      %p164 = scmp.ne.s32.totalorder %s155, %s156
      %p165 = scmp.eq.s32.totalorder %s28, 0
      %p166 = por %p164, %p165
      %p167 = scmp.ne.s32.totalorder %s155, %s156
      %p168 = scmp.eq.s32.totalorder %s29, 2
      %p169 = por %p167, %p168
      %p171 = scmp.ne.s32.totalorder %s156, %s170
      %p172 = scmp.eq.s32.totalorder %s29, 0
      %p173 = por %p171, %p172
      %s175 = sadd.s32 %s174, 1
      %p178 = scmp.eq.s32.totalorder %s23, 2
      %p179 = scmp.ne.s32.totalorder %s174, %s176
      %p180 = scmp.eq.s32.totalorder %s23, 0
      %p181 = por %p179, %p180
      %p182 = scmp.ne.s32.totalorder %s174, %s176
      %p183 = scmp.eq.s32.totalorder %s28, 2
      %p184 = por %p182, %p183
      %p185 = scmp.ne.s32.totalorder %s176, %s177
      %p186 = scmp.eq.s32.totalorder %s28, 0
      %p187 = por %p185, %p186
      %p188 = scmp.ne.s32.totalorder %s176, %s177
      %p189 = scmp.eq.s32.totalorder %s29, 2
      %p190 = por %p188, %p189
      %p192 = scmp.ne.s32.totalorder %s177, %s191
      %p193 = scmp.eq.s32.totalorder %s29, 0
      %p194 = por %p192, %p193
      %s196 = sadd.s32 %s195, 1
      %p199 = scmp.eq.s32.totalorder %s23, 2
      %p200 = scmp.ne.s32.totalorder %s195, %s197
      %p201 = scmp.eq.s32.totalorder %s23, 0
      %p202 = por %p200, %p201
      %p203 = scmp.ne.s32.totalorder %s195, %s197
      %p204 = scmp.eq.s32.totalorder %s28, 2
      %p205 = por %p203, %p204
      %p206 = scmp.ne.s32.totalorder %s197, %s198
      %p207 = scmp.eq.s32.totalorder %s28, 0
      %p208 = por %p206, %p207
      %p209 = scmp.ne.s32.totalorder %s197, %s198
      %p210 = scmp.eq.s32.totalorder %s29, 2
      %p211 = por %p209, %p210
      %p213 = scmp.ne.s32.totalorder %s198, %s212
      %p214 = scmp.eq.s32.totalorder %s29, 0
      %p215 = por %p213, %p214
      %s217 = sadd.s32 %s216, 1
      %p220 = scmp.eq.s32.totalorder %s23, 2
      %p221 = scmp.ne.s32.totalorder %s216, %s218
      %p222 = scmp.eq.s32.totalorder %s23, 0
      %p223 = por %p221, %p222
      %p224 = scmp.ne.s32.totalorder %s216, %s218
      %p225 = scmp.eq.s32.totalorder %s28, 2
      %p226 = por %p224, %p225
      %p227 = scmp.ne.s32.totalorder %s218, %s219
      %p228 = scmp.eq.s32.totalorder %s28, 0
      %p229 = por %p227, %p228
      %p230 = scmp.ne.s32.totalorder %s218, %s219
      %p231 = scmp.eq.s32.totalorder %s29, 2
      %p232 = por %p230, %p231
      %p234 = scmp.ne.s32.totalorder %s219, %s233
      %p235 = scmp.eq.s32.totalorder %s29, 0
      %p236 = por %p234, %p235
      %s237 = ssub.s32 %s30, %s42
      %p238 = scmp.eq.s32.totalorder %s237, 0
      %s240 = sadd.s32 %s239, 1
      %s241 = scalar_select %p238, %s239, %s240
      %p244 = pneg %p238
      %p245 = scmp.eq.s32.totalorder %s23, 2
      %p246 = por %p244, %p245
      %p247 = scmp.ne.s32.totalorder %s239, %s242
      %p248 = scmp.eq.s32.totalorder %s23, 0
      %p249 = por %p247, %p248
      %p250 = scmp.ne.s32.totalorder %s239, %s242
      %p251 = scmp.eq.s32.totalorder %s28, 2
      %p252 = por %p250, %p251
      %p253 = scmp.ne.s32.totalorder %s242, %s243
      %p254 = scmp.eq.s32.totalorder %s28, 0
      %p255 = por %p253, %p254
      %p256 = scmp.ne.s32.totalorder %s242, %s243
      %p257 = scmp.eq.s32.totalorder %s29, 2
      %p258 = por %p256, %p257
      %p260 = scmp.ne.s32.totalorder %s243, %s259
      %p261 = scmp.eq.s32.totalorder %s29, 0
      %p262 = por %p260, %p261
      %s263 = ssub.s32 %s30, %s42
      %p264 = scmp.eq.s32.totalorder %s263, 0
      %s266 = sadd.s32 %s265, 1
      %s267 = scalar_select %p264, %s265, %s266
      %p270 = pneg %p264
      %p271 = scmp.eq.s32.totalorder %s23, 2
      %p272 = por %p270, %p271
      %p273 = scmp.ne.s32.totalorder %s265, %s268
      %p274 = scmp.eq.s32.totalorder %s23, 0
      %p275 = por %p273, %p274
      %p276 = scmp.ne.s32.totalorder %s265, %s268
      %p277 = scmp.eq.s32.totalorder %s28, 2
      %p278 = por %p276, %p277
      %p279 = scmp.ne.s32.totalorder %s268, %s269
      %p280 = scmp.eq.s32.totalorder %s28, 0
      %p281 = por %p279, %p280
      %p282 = scmp.ne.s32.totalorder %s268, %s269
      %p283 = scmp.eq.s32.totalorder %s29, 2
      %p284 = por %p282, %p283
      %p286 = scmp.ne.s32.totalorder %s269, %s285
      %p287 = scmp.eq.s32.totalorder %s29, 0
      %p288 = por %p286, %p287
      %s289 = ssub.s32 %s30, %s42
      %p290 = scmp.eq.s32.totalorder %s289, 0
      %s292 = sadd.s32 %s291, 1
      %s293 = scalar_select %p290, %s291, %s292
      %p296 = pneg %p290
      %p297 = scmp.eq.s32.totalorder %s23, 2
      %p298 = por %p296, %p297
      %p299 = scmp.ne.s32.totalorder %s291, %s294
      %p300 = scmp.eq.s32.totalorder %s23, 0
      %p301 = por %p299, %p300
      %p302 = scmp.ne.s32.totalorder %s291, %s294
      %p303 = scmp.eq.s32.totalorder %s28, 2
      %p304 = por %p302, %p303
      %p305 = scmp.ne.s32.totalorder %s294, %s295
      %p306 = scmp.eq.s32.totalorder %s28, 0
      %p307 = por %p305, %p306
      %p308 = scmp.ne.s32.totalorder %s294, %s295
      %p309 = scmp.eq.s32.totalorder %s29, 2
      %p310 = por %p308, %p309
      %p312 = scmp.ne.s32.totalorder %s295, %s311
      %p313 = scmp.eq.s32.totalorder %s29, 0
      %p314 = por %p312, %p313
      %p315 = scmp.le.s32.totalorder 1, %s23
      %p316 = scmp.lt.s32.totalorder %s23, 4
      %p317 = pnand %p315, %p316
      %p318 = pneg %p317
      // Predicated region
      $region9: #{tpu_custom_call.1} parent=5 // pred_check
        _
      $region10: #{tpu_custom_call.1} parent=5 // pred_check_branch
        %320 = sbr.rel (%p317) target = $region12
      $region11: #{tpu_custom_call.1} parent=5 // pred_region
        %s321 = ssub.s32 %s23, 1
        // Predicated region
        $region13: #{tpu_custom_call.1} parent=11 // pred_check
          %p322 = pneg %p61
        $region14: #{tpu_custom_call.1} parent=11 // pred_check_branch
          %324 = sbr.rel (%p322) target = $region16
        $region15: #{tpu_custom_call.1} parent=11 // pred_region
          %s326 = ssub.s32 64, 64
          %327 = vsyncadd [#allocation4], %s326
          %s328 = smul.addr %s32, 64
          %s329 = scalar_lea.hbm %s0, %s328
          %s331 = sshll.u32 [#allocation3], 4
          %s332 = int_to_ptr.vmem [resolvable:$true] %s331
          %334 = dma.hbm_to_vmem [thread:$0]  %s329, 64, %s332, [#allocation4]
        $region16: #{tpu_custom_call.1} parent=11 // pred_fallthru
          _
        // Predicated region
        $region17: #{tpu_custom_call.1} parent=11 // pred_check
          %p335 = pneg %p82
        $region18: #{tpu_custom_call.1} parent=11 // pred_check_branch
          %337 = sbr.rel (%p335) target = $region20
        $region19: #{tpu_custom_call.1} parent=11 // pred_region
          %s339 = ssub.s32 1024, 1024
          %340 = vsyncadd [#allocation7], %s339
          %s341 = sshll.u32 [#allocation6], 4
          %s342 = int_to_ptr.vmem [resolvable:$true] %s341
          %347 = dma.hbm_to_vmem [thread:$0]  %s1, 1024, %s342, [#allocation7], 64, 64, 4
        $region20: #{tpu_custom_call.1} parent=11 // pred_fallthru
          _
        // Predicated region
        $region21: #{tpu_custom_call.1} parent=11 // pred_check
          %p348 = pneg %p103
        $region22: #{tpu_custom_call.1} parent=11 // pred_check_branch
          %350 = sbr.rel (%p348) target = $region24
        $region23: #{tpu_custom_call.1} parent=11 // pred_region
          _
        $region24: #{tpu_custom_call.1} parent=11 // pred_fallthru
          _
        // Predicated region
        $region25: #{tpu_custom_call.1} parent=11 // pred_check
          %p351 = pneg %p124
        $region26: #{tpu_custom_call.1} parent=11 // pred_check_branch
          %353 = sbr.rel (%p351) target = $region28
        $region27: #{tpu_custom_call.1} parent=11 // pred_region
          %s355 = ssub.s32 2048, 2048
          %356 = vsyncadd [#allocation7], %s355
          %s357 = sshll.u32 [#allocation8], 4
          %s358 = int_to_ptr.vmem [resolvable:$true] %s357
          %363 = dma.hbm_to_vmem [thread:$0]  %s3, 2048, %s358, [#allocation7], 64, 64, 4
        $region28: #{tpu_custom_call.1} parent=11 // pred_fallthru
          _
        // Predicated region
        $region29: #{tpu_custom_call.1} parent=11 // pred_check
          %p364 = pneg %p145
        $region30: #{tpu_custom_call.1} parent=11 // pred_check_branch
          %366 = sbr.rel (%p364) target = $region32
        $region31: #{tpu_custom_call.1} parent=11 // pred_region
          _
        $region32: #{tpu_custom_call.1} parent=11 // pred_fallthru
          _
        // Predicated region
        $region33: #{tpu_custom_call.1} parent=11 // pred_check
          %p367 = pneg %p166
        $region34: #{tpu_custom_call.1} parent=11 // pred_check_branch
          %369 = sbr.rel (%p367) target = $region36
        $region35: #{tpu_custom_call.1} parent=11 // pred_region
          %s371 = ssub.s32 2048, 2048
          %372 = vsyncadd [#allocation10], %s371
          %s373 = sshll.u32 [#allocation9], 4
          %s374 = int_to_ptr.vmem [resolvable:$true] %s373
          %379 = dma.hbm_to_vmem [thread:$0]  %s5, 2048, %s374, [#allocation10], 128, 128, 8
        $region36: #{tpu_custom_call.1} parent=11 // pred_fallthru
          _
        // Predicated region
        $region37: #{tpu_custom_call.1} parent=11 // pred_check
          %p380 = pneg %p187
        $region38: #{tpu_custom_call.1} parent=11 // pred_check_branch
          %382 = sbr.rel (%p380) target = $region40
        $region39: #{tpu_custom_call.1} parent=11 // pred_region
          _
        $region40: #{tpu_custom_call.1} parent=11 // pred_fallthru
          _
        // Predicated region
        $region41: #{tpu_custom_call.1} parent=11 // pred_check
          %p383 = pneg %p208
        $region42: #{tpu_custom_call.1} parent=11 // pred_check_branch
          %385 = sbr.rel (%p383) target = $region44
        $region43: #{tpu_custom_call.1} parent=11 // pred_region
          %s387 = ssub.s32 1024, 1024
          %388 = vsyncadd [#allocation10], %s387
          %s389 = sshll.u32 [#allocation11], 4
          %s390 = int_to_ptr.vmem [resolvable:$true] %s389
          %395 = dma.hbm_to_vmem [thread:$0]  %s7, 1024, %s390, [#allocation10], 64, 64, 4
        $region44: #{tpu_custom_call.1} parent=11 // pred_fallthru
          _
        // Predicated region
        $region45: #{tpu_custom_call.1} parent=11 // pred_check
          %p396 = pneg %p229
        $region46: #{tpu_custom_call.1} parent=11 // pred_check_branch
          %398 = sbr.rel (%p396) target = $region48
        $region47: #{tpu_custom_call.1} parent=11 // pred_region
          _
        $region48: #{tpu_custom_call.1} parent=11 // pred_fallthru
          _
      $region12: #{tpu_custom_call.1} parent=5 // pred_fallthru
        _
      %p399 = scmp.lt.s32.totalorder %s23, 3
      // Predicated region
      $region49: #{tpu_custom_call.1} parent=5 // pred_check
        %p400 = pneg %p399
      $region50: #{tpu_custom_call.1} parent=5 // pred_check_branch
        %402 = sbr.rel (%p400) target = $region52
      $region51: #{tpu_custom_call.1} parent=5 // pred_region
        _
      $region52: #{tpu_custom_call.1} parent=5 // pred_fallthru
        _
      %p403 = scmp.le.s32.totalorder 1, %s23
      %p404 = scmp.lt.s32.totalorder %s23, 4
      %p405 = pnand %p403, %p404
      %p406 = pneg %p405
      // Predicated region
      $region53: #{tpu_custom_call.1} parent=5 // pred_check
        _
      $region54: #{tpu_custom_call.1} parent=5 // pred_check_branch
        %408 = sbr.rel (%p405) target = $region56
      $region55: #{tpu_custom_call.1} parent=5 // pred_region
        %s409 = ssub.s32 %s23, 1
        // Predicated region
        $region57: #{tpu_custom_call.1} parent=55 // pred_check
          %p410 = pneg %p61
        $region58: #{tpu_custom_call.1} parent=55 // pred_check_branch
          %412 = sbr.rel (%p410) target = $region60
        $region59: #{tpu_custom_call.1} parent=55 // pred_region
          %413 = dma.done [#allocation4], 64
        $region60: #{tpu_custom_call.1} parent=55 // pred_fallthru
          _
        // Predicated region
        $region61: #{tpu_custom_call.1} parent=55 // pred_check
          %p414 = pneg %p82
        $region62: #{tpu_custom_call.1} parent=55 // pred_check_branch
          %416 = sbr.rel (%p414) target = $region64
        $region63: #{tpu_custom_call.1} parent=55 // pred_region
          %417 = dma.done [#allocation7], 1024
        $region64: #{tpu_custom_call.1} parent=55 // pred_fallthru
          _
        // Predicated region
        $region65: #{tpu_custom_call.1} parent=55 // pred_check
          %p418 = pneg %p124
        $region66: #{tpu_custom_call.1} parent=55 // pred_check_branch
          %420 = sbr.rel (%p418) target = $region68
        $region67: #{tpu_custom_call.1} parent=55 // pred_region
          %421 = dma.done [#allocation7], 2048
        $region68: #{tpu_custom_call.1} parent=55 // pred_fallthru
          _
        // Predicated region
        $region69: #{tpu_custom_call.1} parent=55 // pred_check
          %p422 = pneg %p166
        $region70: #{tpu_custom_call.1} parent=55 // pred_check_branch
          %424 = sbr.rel (%p422) target = $region72
        $region71: #{tpu_custom_call.1} parent=55 // pred_region
          %425 = dma.done [#allocation10], 2048
        $region72: #{tpu_custom_call.1} parent=55 // pred_fallthru
          _
        // Predicated region
        $region73: #{tpu_custom_call.1} parent=55 // pred_check
          %p426 = pneg %p208
        $region74: #{tpu_custom_call.1} parent=55 // pred_check_branch
          %428 = sbr.rel (%p426) target = $region76
        $region75: #{tpu_custom_call.1} parent=55 // pred_region
          %429 = dma.done [#allocation10], 1024
        $region76: #{tpu_custom_call.1} parent=55 // pred_fallthru
          _
        %p430 = pneg %p61
        %p431 = pneg %p58
        %p432 = pneg %p82
        %p433 = pneg %p79
        %p434 = pneg %p103
        %p435 = pneg %p100
        %p436 = pneg %p124
        %p437 = pneg %p121
        %p438 = pneg %p145
        %p439 = pneg %p142
        %p440 = pneg %p166
        %p441 = pneg %p163
        %p442 = pneg %p187
        %p443 = pneg %p184
        %p444 = pneg %p208
        %p445 = pneg %p205
        %p446 = pneg %p229
        %p447 = pneg %p226
        %p448 = pneg %p255
        %p449 = pneg %p252
        %p450 = pneg %p281
        %p451 = pneg %p278
        %p452 = pneg %p307
        %p453 = pneg %p304
        %p455 = scmp.eq.s32.totalorder %s33, 0
        // Predicated region
        $region77: #{tpu_custom_call.1} parent=55 // pred_check
          %p456 = pneg %p455
        $region78: #{tpu_custom_call.1} parent=55 // pred_check_branch
          %458 = sbr.rel (%p456) target = $region80
        $region79: #{tpu_custom_call.1} parent=55 // pred_region
          %v459 = vld [vmem:[#allocation3] sm:$0xf]
          %v460 = vld [vmem:[#allocation6] sm:$0xf]
          %v461 = vld [vmem:[#allocation6 + $0x4] sm:$0xf]
          %v462 = vld [vmem:[#allocation6 + $0x8] sm:$0xf]
          %v463 = vld [vmem:[#allocation6 + $0xc] sm:$0xf]
          %v464 = vld [vmem:[#allocation6 + $0x10] sm:$0xf]
          %v465 = vld [vmem:[#allocation6 + $0x14] sm:$0xf]
          %v466 = vld [vmem:[#allocation6 + $0x18] sm:$0xf]
          %v467 = vld [vmem:[#allocation6 + $0x1c] sm:$0xf]
          %v468 = vld [vmem:[#allocation6 + $0x20] sm:$0xf]
          %v469 = vld [vmem:[#allocation6 + $0x24] sm:$0xf]
          %v470 = vld [vmem:[#allocation6 + $0x28] sm:$0xf]
          %v471 = vld [vmem:[#allocation6 + $0x2c] sm:$0xf]
          %v472 = vld [vmem:[#allocation6 + $0x30] sm:$0xf]
          %v473 = vld [vmem:[#allocation6 + $0x34] sm:$0xf]
          %v474 = vld [vmem:[#allocation6 + $0x38] sm:$0xf]
          %v475 = vld [vmem:[#allocation6 + $0x3c] sm:$0xf]
          %v476 = vld [vmem:[%s2] sm:$0x1]
          %v478 = vlaneseq
          %v479 = vshrl.u32 %v478, 7
          %v480 = vsub.s32 0, %v479
          %v481 = vrot.slane %v476, %v480
          %v499 = vunpack.c.l.b16 %v460
          %v500 = vunpack.c.l.b16 %v461
          %v501 = vunpack.c.l.b16 %v462
          %v502 = vunpack.c.l.b16 %v463
          %v503 = vunpack.c.l.b16 %v464
          %v504 = vunpack.c.l.b16 %v465
          %v505 = vunpack.c.l.b16 %v466
          %v506 = vunpack.c.l.b16 %v467
          %v507 = vunpack.c.l.b16 %v468
          %v508 = vunpack.c.l.b16 %v469
          %v509 = vunpack.c.l.b16 %v470
          %v510 = vunpack.c.l.b16 %v471
          %v511 = vunpack.c.l.b16 %v472
          %v512 = vunpack.c.l.b16 %v473
          %v513 = vunpack.c.l.b16 %v474
          %v514 = vunpack.c.l.b16 %v475
          %v515 = vpack.c.b16 %v500, %v499
          %v516 = vpack.c.b16 %v502, %v501
          %v517 = vpack.c.b16 %v504, %v503
          %v518 = vpack.c.b16 %v506, %v505
          %v519 = vpack.c.b16 %v508, %v507
          %v520 = vpack.c.b16 %v510, %v509
          %v521 = vpack.c.b16 %v512, %v511
          %v522 = vpack.c.b16 %v514, %v513
          %531 = vmatprep.subr.bf16.mxu0 0
          %532 = vmatpush1.bf16.msra.mxu0 %v515
          %533 = vmatprep.subr.bf16.mxu0 0
          %534 = vmatpush1.bf16.msra.mxu0 %v516
          %535 = vmatprep.subr.bf16.mxu0 0
          %536 = vmatpush1.bf16.msra.mxu0 %v517
          %537 = vmatprep.subr.bf16.mxu0 0
          %538 = vmatpush1.bf16.msra.mxu0 %v518
          %539 = vmatprep.subr.bf16.mxu0 0
          %540 = vmatpush1.bf16.msra.mxu0 %v519
          %541 = vmatprep.subr.bf16.mxu0 0
          %542 = vmatpush1.bf16.msra.mxu0 %v520
          %543 = vmatprep.subr.bf16.mxu0 0
          %544 = vmatpush1.bf16.msra.mxu0 %v521
          %545 = vmatprep.subr.bf16.mxu0 0
          %546 = vmatpush1.bf16.msra.mxu0 %v522
          %547 = vmatprep.subr.bf16.mxu0 0
          %548 = vmatpush1.bf16.msra.mxu0 0
          %549 = vmatprep.subr.bf16.mxu0 0
          %550 = vmatpush1.bf16.msra.mxu0 0
          %551 = vmatprep.subr.bf16.mxu0 0
          %552 = vmatpush1.bf16.msra.mxu0 0
          %553 = vmatprep.subr.bf16.mxu0 0
          %554 = vmatpush1.bf16.msra.mxu0 0
          %555 = vmatprep.subr.bf16.mxu0 0
          %556 = vmatpush1.bf16.msra.mxu0 0
          %557 = vmatprep.subr.bf16.mxu0 0
          %558 = vmatpush1.bf16.msra.mxu0 0
          %559 = vmatprep.subr.bf16.mxu0 0
          %560 = vmatpush1.bf16.msra.mxu0 0
          %561 = vmatprep.subr.bf16.mxu0 0
          %562 = vmatpush1.bf16.msra.mxu0 0
          %563 = vmatprep.mubr.bf16.mxu0 0
          %564 = vmatmul.mubr.bf16.gmra.mrb[0].mxu0 %v459
          %v565 = vpop.f32.mrb[0].mxu0
          %v566 = vadd.f32 %v481, %v565
          %v567 = vpop.f32.mrb[0].mxu0
          %v568 = vpop.f32.mrb[0].mxu0
          %v569 = vpop.f32.mrb[0].mxu0
          %570 = vdwg.mxu0
          %v571 = vmax.f32 %v566, 0.0
          %v572 = vpack.c.bf16 %v571, %v571
          %573 = vst [vmem:[#allocation2] sm:$0xf] %v572
        $region80: #{tpu_custom_call.1} parent=55 // pred_fallthru
          _
        %p574 = scmp.gt.s32.totalorder %s33, 0
        // Predicated region
        $region81: #{tpu_custom_call.1} parent=55 // pred_check
          %p575 = pneg %p574
        $region82: #{tpu_custom_call.1} parent=55 // pred_check_branch
          %577 = sbr.rel (%p575) target = $region84
        $region83: #{tpu_custom_call.1} parent=55 // pred_region
          %s578 = ssub.s32 %s33, 1
          %p579 = scmp.gt.s32.totalorder %s578, 0
          %s580 = scalar_select %p579, %s578, 0
          %v581 = vld [vmem:[#allocation2] sm:$0xf]
          %s582 = smul.u32 %s580, 16
          %s583 = smul.addr %s582, 4
          %s584 = scalar_lea.vmem [#allocation8], %s583
          %v585 = vld [vmem:[%s584] sm:$0xf]
          %v586 = vld [vmem:[%s584 + $0x4] sm:$0xf]
          %v587 = vld [vmem:[%s584 + $0x8] sm:$0xf]
          %v588 = vld [vmem:[%s584 + $0xc] sm:$0xf]
          %v589 = vld [vmem:[%s584 + $0x10] sm:$0xf]
          %v590 = vld [vmem:[%s584 + $0x14] sm:$0xf]
          %v591 = vld [vmem:[%s584 + $0x18] sm:$0xf]
          %v592 = vld [vmem:[%s584 + $0x1c] sm:$0xf]
          %v593 = vld [vmem:[%s584 + $0x20] sm:$0xf]
          %v594 = vld [vmem:[%s584 + $0x24] sm:$0xf]
          %v595 = vld [vmem:[%s584 + $0x28] sm:$0xf]
          %v596 = vld [vmem:[%s584 + $0x2c] sm:$0xf]
          %v597 = vld [vmem:[%s584 + $0x30] sm:$0xf]
          %v598 = vld [vmem:[%s584 + $0x34] sm:$0xf]
          %v599 = vld [vmem:[%s584 + $0x38] sm:$0xf]
          %v600 = vld [vmem:[%s584 + $0x3c] sm:$0xf]
          %s601 = scalar_lea.vmem %s4, %s580
          %v602 = vld [vmem:[%s601] sm:$0x1]
          %v604 = vlaneseq
          %v605 = vshrl.u32 %v604, 7
          %v606 = vsub.s32 0, %v605
          %v607 = vrot.slane %v602, %v606
          %v625 = vunpack.c.l.b16 %v585
          %v626 = vunpack.c.l.b16 %v586
          %v627 = vunpack.c.l.b16 %v587
          %v628 = vunpack.c.l.b16 %v588
          %v629 = vunpack.c.l.b16 %v589
          %v630 = vunpack.c.l.b16 %v590
          %v631 = vunpack.c.l.b16 %v591
          %v632 = vunpack.c.l.b16 %v592
          %v633 = vunpack.c.l.b16 %v593
          %v634 = vunpack.c.l.b16 %v594
          %v635 = vunpack.c.l.b16 %v595
          %v636 = vunpack.c.l.b16 %v596
          %v637 = vunpack.c.l.b16 %v597
          %v638 = vunpack.c.l.b16 %v598
          %v639 = vunpack.c.l.b16 %v599
          %v640 = vunpack.c.l.b16 %v600
          %v641 = vpack.c.b16 %v626, %v625
          %v642 = vpack.c.b16 %v628, %v627
          %v643 = vpack.c.b16 %v630, %v629
          %v644 = vpack.c.b16 %v632, %v631
          %v645 = vpack.c.b16 %v634, %v633
          %v646 = vpack.c.b16 %v636, %v635
          %v647 = vpack.c.b16 %v638, %v637
          %v648 = vpack.c.b16 %v640, %v639
          %657 = vmatprep.subr.bf16.mxu0 0
          %658 = vmatpush1.bf16.msra.mxu0 %v641
          %659 = vmatprep.subr.bf16.mxu0 0
          %660 = vmatpush1.bf16.msra.mxu0 %v642
          %661 = vmatprep.subr.bf16.mxu0 0
          %662 = vmatpush1.bf16.msra.mxu0 %v643
          %663 = vmatprep.subr.bf16.mxu0 0
          %664 = vmatpush1.bf16.msra.mxu0 %v644
          %665 = vmatprep.subr.bf16.mxu0 0
          %666 = vmatpush1.bf16.msra.mxu0 %v645
          %667 = vmatprep.subr.bf16.mxu0 0
          %668 = vmatpush1.bf16.msra.mxu0 %v646
          %669 = vmatprep.subr.bf16.mxu0 0
          %670 = vmatpush1.bf16.msra.mxu0 %v647
          %671 = vmatprep.subr.bf16.mxu0 0
          %672 = vmatpush1.bf16.msra.mxu0 %v648
          %673 = vmatprep.subr.bf16.mxu0 0
          %674 = vmatpush1.bf16.msra.mxu0 0
          %675 = vmatprep.subr.bf16.mxu0 0
          %676 = vmatpush1.bf16.msra.mxu0 0
          %677 = vmatprep.subr.bf16.mxu0 0
          %678 = vmatpush1.bf16.msra.mxu0 0
          %679 = vmatprep.subr.bf16.mxu0 0
          %680 = vmatpush1.bf16.msra.mxu0 0
          %681 = vmatprep.subr.bf16.mxu0 0
          %682 = vmatpush1.bf16.msra.mxu0 0
          %683 = vmatprep.subr.bf16.mxu0 0
          %684 = vmatpush1.bf16.msra.mxu0 0
          %685 = vmatprep.subr.bf16.mxu0 0
          %686 = vmatpush1.bf16.msra.mxu0 0
          %687 = vmatprep.subr.bf16.mxu0 0
          %688 = vmatpush1.bf16.msra.mxu0 0
          %689 = vmatprep.mubr.bf16.mxu0 0
          %690 = vmatmul.mubr.bf16.gmra.mrb[0].mxu0 %v581
          %v691 = vpop.f32.mrb[0].mxu0
          %v692 = vadd.f32 %v607, %v691
          %v693 = vpop.f32.mrb[0].mxu0
          %v694 = vpop.f32.mrb[0].mxu0
          %v695 = vpop.f32.mrb[0].mxu0
          %696 = vdwg.mxu0
          %v697 = vmax.f32 %v692, 0.0
          %v698 = vpack.c.bf16 %v697, %v697
          %699 = vst [vmem:[#allocation2] sm:$0xf] %v698
        $region84: #{tpu_custom_call.1} parent=55 // pred_fallthru
          _
        %p700 = scmp.eq.s32.totalorder %s33, 2
        // Predicated region
        $region85: #{tpu_custom_call.1} parent=55 // pred_check
          %p701 = pneg %p700
        $region86: #{tpu_custom_call.1} parent=55 // pred_check_branch
          %703 = sbr.rel (%p701) target = $region88
        $region87: #{tpu_custom_call.1} parent=55 // pred_region
          %v704 = vld [vmem:[#allocation2] sm:$0xf]
          %v705 = vld [vmem:[#allocation9] sm:$0xff]
          %v706 = vld [vmem:[#allocation9 + $0x8] sm:$0xff]
          %v707 = vld [vmem:[#allocation9 + $0x10] sm:$0xff]
          %v708 = vld [vmem:[#allocation9 + $0x18] sm:$0xff]
          %v709 = vld [vmem:[#allocation9 + $0x20] sm:$0xff]
          %v710 = vld [vmem:[#allocation9 + $0x28] sm:$0xff]
          %v711 = vld [vmem:[#allocation9 + $0x30] sm:$0xff]
          %v712 = vld [vmem:[#allocation9 + $0x38] sm:$0xff]
          %v713 = vld [vmem:[#allocation9 + $0x40] sm:$0xff]
          %v714 = vld [vmem:[#allocation9 + $0x48] sm:$0xff]
          %v715 = vld [vmem:[#allocation9 + $0x50] sm:$0xff]
          %v716 = vld [vmem:[#allocation9 + $0x58] sm:$0xff]
          %v717 = vld [vmem:[#allocation9 + $0x60] sm:$0xff]
          %v718 = vld [vmem:[#allocation9 + $0x68] sm:$0xff]
          %v719 = vld [vmem:[#allocation9 + $0x70] sm:$0xff]
          %v720 = vld [vmem:[#allocation9 + $0x78] sm:$0xff]
          %v721 = vld [vmem:[%s6] sm:$0x3]
          %v723 = vlaneseq
          %v724 = vshrl.u32 %v723, 7
          %v725 = vsub.s32 0, %v724
          %v726 = vrot.slane %v721, %v725
          %v727 = vlaneseq
          %v728 = vshrl.u32 %v727, 7
          %v729 = vsub.s32 1, %v728
          %v730 = vrot.slane %v721, %v729
          %v749 = vunpack.c.l.b16 %v705
          %v750 = vunpack.c.h.b16 %v705
          %v751 = vunpack.c.l.b16 %v706
          %v752 = vunpack.c.h.b16 %v706
          %v753 = vunpack.c.l.b16 %v707
          %v754 = vunpack.c.h.b16 %v707
          %v755 = vunpack.c.l.b16 %v708
          %v756 = vunpack.c.h.b16 %v708
          %v757 = vunpack.c.l.b16 %v709
          %v758 = vunpack.c.h.b16 %v709
          %v759 = vunpack.c.l.b16 %v710
          %v760 = vunpack.c.h.b16 %v710
          %v761 = vunpack.c.l.b16 %v711
          %v762 = vunpack.c.h.b16 %v711
          %v763 = vunpack.c.l.b16 %v712
          %v764 = vunpack.c.h.b16 %v712
          %v765 = vunpack.c.l.b16 %v713
          %v766 = vunpack.c.h.b16 %v713
          %v767 = vunpack.c.l.b16 %v714
          %v768 = vunpack.c.h.b16 %v714
          %v769 = vunpack.c.l.b16 %v715
          %v770 = vunpack.c.h.b16 %v715
          %v771 = vunpack.c.l.b16 %v716
          %v772 = vunpack.c.h.b16 %v716
          %v773 = vunpack.c.l.b16 %v717
          %v774 = vunpack.c.h.b16 %v717
          %v775 = vunpack.c.l.b16 %v718
          %v776 = vunpack.c.h.b16 %v718
          %v777 = vunpack.c.l.b16 %v719
          %v778 = vunpack.c.h.b16 %v719
          %v779 = vunpack.c.l.b16 %v720
          %v780 = vunpack.c.h.b16 %v720
          %v781 = vpack.c.b16 %v751, %v749
          %v782 = vpack.c.b16 %v752, %v750
          %v783 = vpack.c.b16 %v755, %v753
          %v784 = vpack.c.b16 %v756, %v754
          %v785 = vpack.c.b16 %v759, %v757
          %v786 = vpack.c.b16 %v760, %v758
          %v787 = vpack.c.b16 %v763, %v761
          %v788 = vpack.c.b16 %v764, %v762
          %v789 = vpack.c.b16 %v767, %v765
          %v790 = vpack.c.b16 %v768, %v766
          %v791 = vpack.c.b16 %v771, %v769
          %v792 = vpack.c.b16 %v772, %v770
          %v793 = vpack.c.b16 %v775, %v773
          %v794 = vpack.c.b16 %v776, %v774
          %v795 = vpack.c.b16 %v779, %v777
          %v796 = vpack.c.b16 %v780, %v778
          %813 = vmatprep.subr.bf16.mxu0 %v782
          %814 = vmatpush1.bf16.msra.mxu0 %v781
          %815 = vmatprep.subr.bf16.mxu0 %v784
          %816 = vmatpush1.bf16.msra.mxu0 %v783
          %817 = vmatprep.subr.bf16.mxu0 %v786
          %818 = vmatpush1.bf16.msra.mxu0 %v785
          %819 = vmatprep.subr.bf16.mxu0 %v788
          %820 = vmatpush1.bf16.msra.mxu0 %v787
          %821 = vmatprep.subr.bf16.mxu0 %v790
          %822 = vmatpush1.bf16.msra.mxu0 %v789
          %823 = vmatprep.subr.bf16.mxu0 %v792
          %824 = vmatpush1.bf16.msra.mxu0 %v791
          %825 = vmatprep.subr.bf16.mxu0 %v794
          %826 = vmatpush1.bf16.msra.mxu0 %v793
          %827 = vmatprep.subr.bf16.mxu0 %v796
          %828 = vmatpush1.bf16.msra.mxu0 %v795
          %829 = vmatprep.subr.bf16.mxu0 0
          %830 = vmatpush1.bf16.msra.mxu0 0
          %831 = vmatprep.subr.bf16.mxu0 0
          %832 = vmatpush1.bf16.msra.mxu0 0
          %833 = vmatprep.subr.bf16.mxu0 0
          %834 = vmatpush1.bf16.msra.mxu0 0
          %835 = vmatprep.subr.bf16.mxu0 0
          %836 = vmatpush1.bf16.msra.mxu0 0
          %837 = vmatprep.subr.bf16.mxu0 0
          %838 = vmatpush1.bf16.msra.mxu0 0
          %839 = vmatprep.subr.bf16.mxu0 0
          %840 = vmatpush1.bf16.msra.mxu0 0
          %841 = vmatprep.subr.bf16.mxu0 0
          %842 = vmatpush1.bf16.msra.mxu0 0
          %843 = vmatprep.subr.bf16.mxu0 0
          %844 = vmatpush1.bf16.msra.mxu0 0
          %845 = vmatprep.mubr.bf16.mxu0 0
          %846 = vmatmul.mubr.bf16.gmra.mrb[0].mxu0 %v704
          %v847 = vpop.f32.mrb[0].mxu0
          %v848 = vadd.f32 %v726, %v847
          %v849 = vpop.f32.mrb[0].mxu0
          %v850 = vadd.f32 %v730, %v849
          %v851 = vpop.f32.mrb[0].mxu0
          %v852 = vpop.f32.mrb[0].mxu0
          %853 = vdwg.mxu0
          %854 = vmax.xlane.f32.xlu0 %v850
          %v855 = vpop.xlane.xlu0 %854
          %v856 = vsub.f32 %v850, %v855
          %v857 = vmul.f32 %v856, 1.442695
          %v858 = vpow.pop %v857
          %859 = vadd.xlane.f32.xlu0 %v858
          %v860 = vpop.xlane.xlu0 %859
          %v861 = vrcp.pop %v860
          %v862 = vmul.f32 %v858, %v861
          %v863 = vpack.c.bf16 %v862, %v862
          %v864 = vld [vmem:[#allocation11] sm:$0xf]
          %v865 = vld [vmem:[#allocation11 + $0x4] sm:$0xf]
          %v866 = vld [vmem:[#allocation11 + $0x8] sm:$0xf]
          %v867 = vld [vmem:[#allocation11 + $0xc] sm:$0xf]
          %v868 = vld [vmem:[#allocation11 + $0x10] sm:$0xf]
          %v869 = vld [vmem:[#allocation11 + $0x14] sm:$0xf]
          %v870 = vld [vmem:[#allocation11 + $0x18] sm:$0xf]
          %v871 = vld [vmem:[#allocation11 + $0x1c] sm:$0xf]
          %v872 = vld [vmem:[#allocation11 + $0x20] sm:$0xf]
          %v873 = vld [vmem:[#allocation11 + $0x24] sm:$0xf]
          %v874 = vld [vmem:[#allocation11 + $0x28] sm:$0xf]
          %v875 = vld [vmem:[#allocation11 + $0x2c] sm:$0xf]
          %v876 = vld [vmem:[#allocation11 + $0x30] sm:$0xf]
          %v877 = vld [vmem:[#allocation11 + $0x34] sm:$0xf]
          %v878 = vld [vmem:[#allocation11 + $0x38] sm:$0xf]
          %v879 = vld [vmem:[#allocation11 + $0x3c] sm:$0xf]
          %v880 = vld [vmem:[%s8] sm:$0x1]
          %v882 = vlaneseq
          %v883 = vshrl.u32 %v882, 7
          %v884 = vsub.s32 0, %v883
          %v885 = vrot.slane %v880, %v884
          %v903 = vunpack.c.l.b16 %v864
          %v904 = vunpack.c.l.b16 %v865
          %v905 = vunpack.c.l.b16 %v866
          %v906 = vunpack.c.l.b16 %v867
          %v907 = vunpack.c.l.b16 %v868
          %v908 = vunpack.c.l.b16 %v869
          %v909 = vunpack.c.l.b16 %v870
          %v910 = vunpack.c.l.b16 %v871
          %v911 = vunpack.c.l.b16 %v872
          %v912 = vunpack.c.l.b16 %v873
          %v913 = vunpack.c.l.b16 %v874
          %v914 = vunpack.c.l.b16 %v875
          %v915 = vunpack.c.l.b16 %v876
          %v916 = vunpack.c.l.b16 %v877
          %v917 = vunpack.c.l.b16 %v878
          %v918 = vunpack.c.l.b16 %v879
          %v919 = vpack.c.b16 %v904, %v903
          %v920 = vpack.c.b16 %v906, %v905
          %v921 = vpack.c.b16 %v908, %v907
          %v922 = vpack.c.b16 %v910, %v909
          %v923 = vpack.c.b16 %v912, %v911
          %v924 = vpack.c.b16 %v914, %v913
          %v925 = vpack.c.b16 %v916, %v915
          %v926 = vpack.c.b16 %v918, %v917
          %935 = vmatprep.subr.bf16.mxu0 0
          %936 = vmatpush1.bf16.msra.mxu0 %v919
          %937 = vmatprep.subr.bf16.mxu0 0
          %938 = vmatpush1.bf16.msra.mxu0 %v920
          %939 = vmatprep.subr.bf16.mxu0 0
          %940 = vmatpush1.bf16.msra.mxu0 %v921
          %941 = vmatprep.subr.bf16.mxu0 0
          %942 = vmatpush1.bf16.msra.mxu0 %v922
          %943 = vmatprep.subr.bf16.mxu0 0
          %944 = vmatpush1.bf16.msra.mxu0 %v923
          %945 = vmatprep.subr.bf16.mxu0 0
          %946 = vmatpush1.bf16.msra.mxu0 %v924
          %947 = vmatprep.subr.bf16.mxu0 0
          %948 = vmatpush1.bf16.msra.mxu0 %v925
          %949 = vmatprep.subr.bf16.mxu0 0
          %950 = vmatpush1.bf16.msra.mxu0 %v926
          %951 = vmatprep.subr.bf16.mxu0 0
          %952 = vmatpush1.bf16.msra.mxu0 0
          %953 = vmatprep.subr.bf16.mxu0 0
          %954 = vmatpush1.bf16.msra.mxu0 0
          %955 = vmatprep.subr.bf16.mxu0 0
          %956 = vmatpush1.bf16.msra.mxu0 0
          %957 = vmatprep.subr.bf16.mxu0 0
          %958 = vmatpush1.bf16.msra.mxu0 0
          %959 = vmatprep.subr.bf16.mxu0 0
          %960 = vmatpush1.bf16.msra.mxu0 0
          %961 = vmatprep.subr.bf16.mxu0 0
          %962 = vmatpush1.bf16.msra.mxu0 0
          %963 = vmatprep.subr.bf16.mxu0 0
          %964 = vmatpush1.bf16.msra.mxu0 0
          %965 = vmatprep.subr.bf16.mxu0 0
          %966 = vmatpush1.bf16.msra.mxu0 0
          %967 = vmatprep.mubr.bf16.mxu0 0
          %968 = vmatmul.mubr.bf16.gmra.mrb[0].mxu0 %v863
          %v969 = vpop.f32.mrb[0].mxu0
          %v970 = vadd.f32 %v885, %v969
          %v971 = vpop.f32.mrb[0].mxu0
          %v972 = vpop.f32.mrb[0].mxu0
          %v973 = vpop.f32.mrb[0].mxu0
          %974 = vdwg.mxu0
          %975 = vmax.xlane.f32.xlu0 %v970
          %v976 = vpop.xlane.xlu0 %975
          %v977 = vsub.f32 %v970, %v976
          %v978 = vmul.f32 %v977, 1.442695
          %v979 = vpow.pop %v978
          %980 = vadd.xlane.f32.xlu0 %v979
          %v981 = vpop.xlane.xlu0 %980
          %v982 = vrcp.pop %v981
          %v983 = vmul.f32 %v979, %v982
          %984 = vst [vmem:[#allocation12] sm:$0xff] %v848
          %985 = vst [vmem:[#allocation13] sm:$0xff] %v862
          %986 = vst [vmem:[#allocation15] sm:$0xff] %v983
        $region88: #{tpu_custom_call.1} parent=55 // pred_fallthru
          _
        // Predicated region
        $region89: #{tpu_custom_call.1} parent=55 // pred_check
          %p987 = pneg %p252
        $region90: #{tpu_custom_call.1} parent=55 // pred_check_branch
          %989 = sbr.rel (%p987) target = $region92
        $region91: #{tpu_custom_call.1} parent=55 // pred_region
          %s991 = ssub.s32 128, 128
          %992 = vsyncadd [#allocation5], %s991
          %s993 = smul.addr %s32, 128
          %s994 = scalar_lea.hbm %s9, %s993
          %s996 = sshll.u32 [#allocation12], 4
          %s997 = int_to_ptr.vmem [resolvable:$true] %s996
          %999 = dma.vmem_to_hbm [thread:$0]  %s997, 128, %s994, [#allocation5]
        $region92: #{tpu_custom_call.1} parent=55 // pred_fallthru
          _
        // Predicated region
        $region93: #{tpu_custom_call.1} parent=55 // pred_check
          %p1000 = pneg %p278
        $region94: #{tpu_custom_call.1} parent=55 // pred_check_branch
          %1002 = sbr.rel (%p1000) target = $region96
        $region95: #{tpu_custom_call.1} parent=55 // pred_region
          %s1004 = ssub.s32 128, 128
          %1005 = vsyncadd [#allocation14], %s1004
          %s1006 = smul.addr %s32, 128
          %s1007 = scalar_lea.hbm %s10, %s1006
          %s1009 = sshll.u32 [#allocation13], 4
          %s1010 = int_to_ptr.vmem [resolvable:$true] %s1009
          %1012 = dma.vmem_to_hbm [thread:$0]  %s1010, 128, %s1007, [#allocation14]
        $region96: #{tpu_custom_call.1} parent=55 // pred_fallthru
          _
        // Predicated region
        $region97: #{tpu_custom_call.1} parent=55 // pred_check
          %p1013 = pneg %p304
        $region98: #{tpu_custom_call.1} parent=55 // pred_check_branch
          %1015 = sbr.rel (%p1013) target = $region100
        $region99: #{tpu_custom_call.1} parent=55 // pred_region
          %s1017 = ssub.s32 128, 128
          %1018 = vsyncadd [#allocation14], %s1017
          %s1019 = smul.addr %s32, 128
          %s1020 = scalar_lea.hbm %s11, %s1019
          %s1022 = sshll.u32 [#allocation15], 4
          %s1023 = int_to_ptr.vmem [resolvable:$true] %s1022
          %1025 = dma.vmem_to_hbm [thread:$0]  %s1023, 128, %s1020, [#allocation14]
        $region100: #{tpu_custom_call.1} parent=55 // pred_fallthru
          _
        // Predicated region
        $region101: #{tpu_custom_call.1} parent=55 // pred_check
          %p1026 = pneg %p252
        $region102: #{tpu_custom_call.1} parent=55 // pred_check_branch
          %1028 = sbr.rel (%p1026) target = $region104
        $region103: #{tpu_custom_call.1} parent=55 // pred_region
          %1029 = dma.done [#allocation5], 128
        $region104: #{tpu_custom_call.1} parent=55 // pred_fallthru
          _
        // Predicated region
        $region105: #{tpu_custom_call.1} parent=55 // pred_check
          %p1030 = pneg %p278
        $region106: #{tpu_custom_call.1} parent=55 // pred_check_branch
          %1032 = sbr.rel (%p1030) target = $region108
        $region107: #{tpu_custom_call.1} parent=55 // pred_region
          %1033 = dma.done [#allocation14], 128
        $region108: #{tpu_custom_call.1} parent=55 // pred_fallthru
          _
        // Predicated region
        $region109: #{tpu_custom_call.1} parent=55 // pred_check
          %p1034 = pneg %p304
        $region110: #{tpu_custom_call.1} parent=55 // pred_check_branch
          %1036 = sbr.rel (%p1034) target = $region112
        $region111: #{tpu_custom_call.1} parent=55 // pred_region
          %1037 = dma.done [#allocation14], 128
        $region112: #{tpu_custom_call.1} parent=55 // pred_fallthru
          _
      $region56: #{tpu_custom_call.1} parent=5 // pred_fallthru
        _
      %p1038 = scmp.le.s32.totalorder 2, %s23
      // Predicated region
      $region113: #{tpu_custom_call.1} parent=5 // pred_check
        %p1039 = pneg %p1038
      $region114: #{tpu_custom_call.1} parent=5 // pred_check_branch
        %1041 = sbr.rel (%p1039) target = $region116
      $region115: #{tpu_custom_call.1} parent=5 // pred_region
        %s1042 = ssub.s32 %s23, 2
      $region116: #{tpu_custom_call.1} parent=5 // pred_fallthru
        _
    $region6: #{tpu_custom_call.1} parent=1 // loop_footer
      %s27 = sadd.s32 1, %s23
    $region7: #{tpu_custom_call.1} parent=1 // loop_footer_branch
      %22 = sbr.rel target = $region3
    $region8: #{tpu_custom_call.1} parent=1 // loop_exit
      _
    %1043 = vsyncpa [#allocation4], 1
    %s1044 = scalar_lea.sflag [#allocation4], 1
    %1045 = vsyncpa %s1044, 1
    %1046 = vsyncpa [#allocation7], 1
    %1047 = vsyncpa [#allocation10], 1
    %1048 = vsyncpa [#allocation5], 1
    %s1049 = scalar_lea.sflag [#allocation5], 1
    %1050 = vsyncpa %s1049, 1
    %1051 = vsyncpa [#allocation14], 1

</llo_original>
